<compile_context>
chip_gen: v5e
topology: v5e:2x2
jax: 0.10.0
libtpu: 0.0.40
codegen_flags: <defaults>
</compile_context>

<pallas_src>
import functools
import math

import jax
import jax.numpy as jnp
from jax import lax
from jax.experimental import pallas as pl
from jax.experimental.pallas import tpu as pltpu


# --------------------------- projection kernels -----------------------------

def _linear_kernel(x_ref, w_ref, b_ref, o_ref, *, compute_dtype, scale):
    # x: (tm, K), w: (K, N), b: (1, N) -> o: (tm, N); bf16 MXU, f32 accumulate.
    acc = jnp.dot(x_ref[...].astype(compute_dtype),
                  w_ref[...].astype(compute_dtype),
                  preferred_element_type=jnp.float32)
    acc = acc + b_ref[...]
    if scale is not None:               # fold softmax 1/sqrt(d_k) into the Q projection
        acc = acc * scale
    o_ref[...] = acc.astype(o_ref.dtype)


def pallas_linear(x, w, b, *, scale=None, out_dtype=None,
                  compute_dtype=jnp.bfloat16, block_m=1024):
    """y = (x @ w + b) * scale.  M axis tiled; weight & bias stay VMEM-resident."""
    M, K = x.shape
    N = w.shape[1]
    out_dtype = x.dtype if out_dtype is None else out_dtype
    tm = M if M <= block_m else block_m
    return pl.pallas_call(
        functools.partial(_linear_kernel, compute_dtype=compute_dtype, scale=scale),
        out_shape=jax.ShapeDtypeStruct((M, N), out_dtype),
        grid=(pl.cdiv(M, tm),),
        in_specs=[
            pl.BlockSpec((tm, K), lambda i: (i, 0)),   # activations: streamed
            pl.BlockSpec((K, N), lambda i: (0, 0)),    # weight: resident
            pl.BlockSpec((1, N), lambda i: (0, 0)),    # bias: resident
        ],
        out_specs=pl.BlockSpec((tm, N), lambda i: (i, 0)),
        compiler_params=pltpu.CompilerParams(dimension_semantics=("parallel",)),
    )(x, w, b.reshape(1, N))


def _qkv_kernel(x_ref, wq_ref, wk_ref, wv_ref, bq_ref, bk_ref, bv_ref,
                q_ref, k_ref, v_ref, *, compute_dtype, q_scale):
    # One activation tile read from HBM, three resident-weight matmuls, three
    # dense outputs (no lane slicing of a fused (tm, 3D) result).
    x = x_ref[...].astype(compute_dtype)

    def proj(w_ref, b_ref, o_ref, s):
        acc = jnp.dot(x, w_ref[...].astype(compute_dtype),
                      preferred_element_type=jnp.float32) + b_ref[...]
        if s is not None:
            acc = acc * s
        o_ref[...] = acc.astype(o_ref.dtype)

    proj(wq_ref, bq_ref, q_ref, q_scale)
    proj(wk_ref, bk_ref, k_ref, None)
    proj(wv_ref, bv_ref, v_ref, None)


def pallas_qkv_proj(x, wq, wk, wv, bq, bk, bv, *, q_scale, out_dtype=None,
                    compute_dtype=jnp.bfloat16, block_m=1024):
    """Fused self-attention projection: input read from HBM once, q/k/v emitted
    as three separate (M, D) arrays (no XLA slice copies downstream)."""
    M, K = x.shape
    N = wq.shape[1]
    out_dtype = x.dtype if out_dtype is None else out_dtype
    tm = M if M <= block_m else block_m
    w_spec = pl.BlockSpec((K, N), lambda i: (0, 0))
    b_spec = pl.BlockSpec((1, N), lambda i: (0, 0))
    o_spec = pl.BlockSpec((tm, N), lambda i: (i, 0))
    return pl.pallas_call(
        functools.partial(_qkv_kernel, compute_dtype=compute_dtype, q_scale=q_scale),
        out_shape=tuple(jax.ShapeDtypeStruct((M, N), out_dtype) for _ in range(3)),
        grid=(pl.cdiv(M, tm),),
        in_specs=[pl.BlockSpec((tm, K), lambda i: (i, 0)),
                  w_spec, w_spec, w_spec, b_spec, b_spec, b_spec],
        out_specs=(o_spec, o_spec, o_spec),
        compiler_params=pltpu.CompilerParams(dimension_semantics=("parallel",)),
    )(x, wq, wk, wv, bq.reshape(1, N), bk.reshape(1, N), bv.reshape(1, N))


# ----------------------------- attention kernel ------------------------------

def _attn_kernel(q_ref, k_ref, v_ref, o_ref, *rest):
    # q_ref:        (tq, 1, H, dk)   -- one q-tile of one batch element, all heads
    # k_ref, v_ref: (Sk, 1, H, dk)
    # o_ref:        (tq, 1, 1, H*dk) -- lane-dense output block
    # optional attn_ref (rest[0]): (1, H, tq, Sk)
    attn_ref = rest[0] if rest else None

    q = jnp.squeeze(q_ref[...], axis=1)   # (tq, H, dk); scale folded in upstream
    k = jnp.squeeze(k_ref[...], axis=1)   # (Sk, H, dk)
    v = jnp.squeeze(v_ref[...], axis=1)   # (Sk, H, dk)

    # Head-batched QK^T on the MXU (H is the batch dim): (H, tq, Sk), f32 accum.
    s = lax.dot_general(q, k, (((2,), (2,)), ((1,), (1,))),
                        preferred_element_type=jnp.float32)

    # softmax over the key axis -- matches nn.Softmax(dim=1) on scores[i, j, b, h].
    m = jnp.max(s, axis=-1, keepdims=True)
    e = jnp.exp(s - m)
    p = e * pl.reciprocal(jnp.sum(e, axis=-1, keepdims=True), approx=True)

    # Head-batched PV on the MXU: (H, tq, dk).
    o = lax.dot_general(p.astype(v.dtype), v, (((2,), (0,)), ((0,), (1,))),
                        preferred_element_type=jnp.float32)

    # Lane-dense store: head h occupies lanes [h*dk, (h+1)*dk) of the (tq, D) block.
    heads = o.shape[0]
    o_dense = jnp.concatenate([o[h] for h in range(heads)], axis=-1)   # (tq, H*dk)
    o_ref[...] = o_dense[:, None, None, :].astype(o_ref.dtype)

    if attn_ref is not None:
        attn_ref[...] = p[None].astype(attn_ref.dtype)   # one batched (1,H,tq,Sk) store


# ------------------------------ MHA wrapper --------------------------------

def multi_head_attention(query, key, value, params, *, return_probs=False,
                         compute_dtype=jnp.bfloat16, block_q=256, block_m=1024,
                         vmem_limit_bytes=None):
    """Forward pass of MultiHeadAttention.

    query/key/value: [seq_len, batch_size, d_model]  (PyTorch convention)
    Returns (out [seq_q, batch, d_model], attn [seq_q, seq_k, batch, heads] or None).
    """
    Sq, B, D = query.shape
    Sk = key.shape[0]
    H = params["heads"]
    dk = D // H
    scale = 1.0 / math.sqrt(dk)

    # ---- input projections (self-attention: fused, input read from HBM once) ----
    if (query is key) and (key is value):
        q2, k2, v2 = pallas_qkv_proj(
            query.reshape(Sq * B, D),
            params["wq"], params["wk"], params["wv"],
            params["bq"], params["bk"], params["bv"],
            q_scale=scale, out_dtype=compute_dtype,
            compute_dtype=compute_dtype, block_m=block_m)
    else:
        q2 = pallas_linear(query.reshape(Sq * B, D), params["wq"], params["bq"],
                           scale=scale, out_dtype=compute_dtype,
                           compute_dtype=compute_dtype, block_m=block_m)
        k2 = pallas_linear(key.reshape(Sk * B, D), params["wk"], params["bk"],
                           out_dtype=compute_dtype,
                           compute_dtype=compute_dtype, block_m=block_m)
        v2 = pallas_linear(value.reshape(Sk * B, D), params["wv"], params["bv"],
                           out_dtype=compute_dtype,
                           compute_dtype=compute_dtype, block_m=block_m)
    # pure reshapes, no transposes: (S*B, D) -> (S, B, H, dk)
    q = q2.reshape(Sq, B, H, dk)
    k = k2.reshape(Sk, B, H, dk)
    v = v2.reshape(Sk, B, H, dk)

    # ---- attention: grid over (batch, query tiles); all heads batched per step ----
    tq = Sq if Sq <= block_q else block_q
    n_q = pl.cdiv(Sq, tq)

    out_shape = jax.ShapeDtypeStruct((Sq, B, 1, D), compute_dtype)
    out_spec = pl.BlockSpec((tq, 1, 1, D), lambda b, qi: (qi, b, 0, 0))
    if return_probs:
        out_shape = (out_shape, jax.ShapeDtypeStruct((B, H, Sq, Sk), jnp.float32))
        out_spec = (out_spec, pl.BlockSpec((1, H, tq, Sk), lambda b, qi: (b, 0, qi, 0)))

    res = pl.pallas_call(
        _attn_kernel,
        out_shape=out_shape,
        grid=(B, n_q),
        in_specs=[
            pl.BlockSpec((tq, 1, H, dk), lambda b, qi: (qi, b, 0, 0)),
            pl.BlockSpec((Sk, 1, H, dk), lambda b, qi: (0, b, 0, 0)),
            pl.BlockSpec((Sk, 1, H, dk), lambda b, qi: (0, b, 0, 0)),
        ],
        out_specs=out_spec,
        compiler_params=pltpu.CompilerParams(
            dimension_semantics=("parallel", "parallel"),
            vmem_limit_bytes=vmem_limit_bytes),
    )(q, k, v)

    if return_probs:
        o4, probs = res
    else:
        o4, probs = res, None

    # (Sq, B, 1, D) -> (Sq*B, D) is a pure reshape feeding the output projection.
    out = pallas_linear(o4.reshape(Sq * B, D), params["wo"], params["bo"],
                        out_dtype=query.dtype, compute_dtype=compute_dtype,
                        block_m=block_m).reshape(Sq, B, D)

    if return_probs:
        # torch layout [i, j, b, h]; only materialized on the visualization path.
        return out, jnp.transpose(probs, (2, 3, 0, 1))
    return out, None


# ------------------------------ reference -----------------------------------

def reference_mha(query, key, value, params):
    Sq, B, D = query.shape
    Sk = key.shape[0]
    H = params["heads"]
    dk = D // H
    scale = 1.0 / math.sqrt(dk)

    def project(x, w, b):
        S = x.shape[0]
        return (x.reshape(S * B, D) @ w + b).reshape(S, B, H, dk)

    q = project(query, params["wq"], params["bq"])
    k = project(key, params["wk"], params["bk"])
    v = project(value, params["wv"], params["bv"])

    scores = jnp.einsum("ibhd,jbhd->ijbh", q, k) * scale
    attn = jax.nn.softmax(scores, axis=1)
    x = jnp.einsum("ijbh,jbhd->ibhd", attn, v).reshape(Sq, B, D)
    out = (x.reshape(Sq * B, D) @ params["wo"] + params["bo"]).reshape(Sq, B, D)
    return out, attn


# --------------------------------- main --------------------------------------

if __name__ == "__main__":
    SEQ, BATCH, D_MODEL, HEADS = 8, 2, 32, 4

    root = jax.random.PRNGKey(0)
    keys = jax.random.split(root, 12)

    def w_init(kk, shape):
        return (0.02 * jax.random.normal(kk, shape)).astype(jnp.float32)

    params = {
        "heads": HEADS,
        # weights stored pre-transposed: y = x @ W + b, W: (in, out)
        "wq": w_init(keys[0], (D_MODEL, D_MODEL)),
        "bq": w_init(keys[1], (D_MODEL,)),
        "wk": w_init(keys[2], (D_MODEL, D_MODEL)),
        "bk": w_init(keys[3], (D_MODEL,)),
        "wv": w_init(keys[4], (D_MODEL, D_MODEL)),
        "bv": w_init(keys[5], (D_MODEL,)),
        "wo": w_init(keys[6], (D_MODEL, D_MODEL)),
        "bo": w_init(keys[7], (D_MODEL,)),
    }

    query = jax.random.normal(keys[8], (SEQ, BATCH, D_MODEL), dtype=jnp.float32)
    key = jax.random.normal(keys[9], (SEQ, BATCH, D_MODEL), dtype=jnp.float32)
    value = jax.random.normal(keys[10], (SEQ, BATCH, D_MODEL), dtype=jnp.float32)

    # bf16 MXU inputs -> loosened tolerances vs. the f32 XLA reference.
    OUT_TOL = dict(rtol=2e-2, atol=2e-3)
    ATTN_TOL = dict(rtol=2e-2, atol=5e-3)

    # cross-attention path (separate q/k/v projections), probabilities requested
    out, attn = multi_head_attention(query, key, value, params, return_probs=True)
    out = jax.block_until_ready(out)
    attn = jax.block_until_ready(attn)

    ref_out, ref_attn = reference_mha(query, key, value, params)
    assert out.shape == (SEQ, BATCH, D_MODEL)
    assert attn.shape == (SEQ, SEQ, BATCH, HEADS)
    assert jnp.allclose(out, ref_out, **OUT_TOL), "output mismatch"
    assert jnp.allclose(attn, ref_attn, **ATTN_TOL), "attn mismatch"

    # self-attention hot path (fused QKV projection, no probability output)
    out_sa, _ = multi_head_attention(query, query, query, params)
    out_sa = jax.block_until_ready(out_sa)
    ref_out_sa, ref_attn_sa = reference_mha(query, query, query, params)
    assert jnp.allclose(out_sa, ref_out_sa, **OUT_TOL), "self-attn output mismatch"

    # self-attention with probabilities (visualization path)
    out_sa2, attn_sa = multi_head_attention(query, query, query, params,
                                            return_probs=True)
    out_sa2 = jax.block_until_ready(out_sa2)
    attn_sa = jax.block_until_ready(attn_sa)
    assert jnp.allclose(out_sa2, ref_out_sa, **OUT_TOL), "self-attn output mismatch (probs path)"
    assert jnp.allclose(attn_sa, ref_attn_sa, **ATTN_TOL), "self-attn probs mismatch"

    print("KERNEL_OK")
</pallas_src>

<mosaic_0001>
module attributes {stable_mosaic.version = 11 : i64} {
  func.func @_linear_kernel(%arg0: i32, %arg1: memref<16x32xf32, #tpu.memory_space<vmem>>, %arg2: memref<32x32xf32, #tpu.memory_space<vmem>>, %arg3: memref<1x32xf32, #tpu.memory_space<vmem>>, %arg4: memref<16x32xbf16, #tpu.memory_space<vmem>>) attributes {dimension_semantics = [#tpu.dimension_semantics<parallel>], iteration_bounds = array<i64: 1>, scalar_prefetch = 0 : i64, scratch_operands = 0 : i64, tpu.core_type = #tpu.core_type<tc>, window_params = [{transform_indices = @transform_0, window_bounds = array<i64: 16, 32>}, {pipeline_mode = #tpu.pipeline_mode<synchronous>, transform_indices = @transform_1, window_bounds = array<i64: 32, 32>}, {pipeline_mode = #tpu.pipeline_mode<synchronous>, transform_indices = @transform_2, window_bounds = array<i64: 1, 32>}, {transform_indices = @transform_3, window_bounds = array<i64: 16, 32>}]} {
    %c0 = arith.constant 0 : index
    %c0_0 = arith.constant 0 : index
    %0 = vector.load %arg1[%c0, %c0_0] : memref<16x32xf32, #tpu.memory_space<vmem>>, vector<16x32xf32>
    %1 = arith.truncf %0 : vector<16x32xf32> to vector<16x32xbf16>
    %c0_1 = arith.constant 0 : index
    %c0_2 = arith.constant 0 : index
    %2 = vector.load %arg2[%c0_1, %c0_2] : memref<32x32xf32, #tpu.memory_space<vmem>>, vector<32x32xf32>
    %3 = arith.truncf %2 : vector<32x32xf32> to vector<32x32xbf16>
    %cst = arith.constant dense<0.000000e+00> : vector<16x32xf32>
    %4 = tpu.matmul %1, %3, %cst {dimension_numbers = #tpu.dot_dimension_numbers<[1], [0], [0], [1], [0, 0, 1, 1], [], []>} : vector<16x32xbf16>, vector<32x32xbf16>, vector<16x32xf32> -> vector<16x32xf32>
    %c0_3 = arith.constant 0 : index
    %c0_4 = arith.constant 0 : index
    %5 = vector.load %arg3[%c0_3, %c0_4] : memref<1x32xf32, #tpu.memory_space<vmem>>, vector<1x32xf32>
    %6 = vector.broadcast %5 : vector<1x32xf32> to vector<16x32xf32>
    %7 = arith.addf %4, %6 : vector<16x32xf32>
    %cst_5 = arith.constant 0.353553385 : f32
    %8 = vector.broadcast %cst_5 : f32 to vector<16x32xf32>
    %9 = arith.mulf %7, %8 : vector<16x32xf32>
    %10 = arith.truncf %9 : vector<16x32xf32> to vector<16x32xbf16>
    %c0_6 = arith.constant 0 : index
    %c0_7 = arith.constant 0 : index
    %11 = vector.load %arg4[%c0_6, %c0_7] : memref<16x32xbf16, #tpu.memory_space<vmem>>, vector<16x32xbf16>
    tpu.vector_store %arg4[%c0_6, %c0_7], %10 {strides = array<i32>} : memref<16x32xbf16, #tpu.memory_space<vmem>>, vector<16x32xbf16>,
    return
  }
  func.func @transform_0(%arg0: i32) -> (i32, i32) {
    %c0_i32 = arith.constant 0 : i32
    %c0_i32_0 = arith.constant 0 : i32
    return %arg0, %c0_i32 : i32, i32
  }
  func.func @transform_1(%arg0: i32) -> (i32, i32) {
    %c0_i32 = arith.constant 0 : i32
    %c0_i32_0 = arith.constant 0 : i32
    %c0_i32_1 = arith.constant 0 : i32
    return %c0_i32, %c0_i32_0 : i32, i32
  }
  func.func @transform_2(%arg0: i32) -> (i32, i32) {
    %c0_i32 = arith.constant 0 : i32
    %c0_i32_0 = arith.constant 0 : i32
    %c0_i32_1 = arith.constant 0 : i32
    return %c0_i32, %c0_i32_0 : i32, i32
  }
  func.func @transform_3(%arg0: i32) -> (i32, i32) {
    %c0_i32 = arith.constant 0 : i32
    %c0_i32_0 = arith.constant 0 : i32
    return %arg0, %c0_i32 : i32, i32
  }
}

</mosaic_0001>

<llo_original>
// kernel: tpu_custom_call.1
$region0: #{tpu_custom_call.1}
  #allocation0 [shape = 'u32[]', space=smem, size = 0x4, offset = 0x4, fixed_abs, tag = 'smem constant byte address 0x4 - core index']
  #allocation1 [shape = 'u32[72,128]{1,0:T(1,128)}', space=vmem, size = 0x9000, scoped, tag = 'internal scratch']
  %s0 = inlined_call_operand.hbm [shape: f32[16,32], index: 0, kind: input, shape index: {}]
  %s1 = inlined_call_operand.hbm [shape: f32[32,32], index: 1, kind: input, shape index: {}]
  %s2 = inlined_call_operand.vmem [shape: f32[1,32], index: 2, kind: input, shape index: {}]
  %s3 = inlined_call_operand.hbm [shape: bf16[16,32], index: 3, kind: output, shape index: {}]
  %s4 = sld [smem:[#allocation0]]
  $region30: #{tpu_custom_call.1} parent=0
    _
  %s6 = ssub.s32 1, %s4
  %s7 = scalar_select 0, %s6, %s4
  $region1: #{tpu_custom_call.1} parent=0
    #allocation2 [shape = 'u8[8192]{0}', space=vmem, size = 0x2000, scoped, tag = 'input window, operand 0, single buffered']
    #allocation3 [shape = 's32[1]{0}', space=sflag, size = 0x4, scoped, tag = 'scoped memory for tpu_custom_call.1']
    #allocation4 [shape = 's32[1]{0}', space=sflag, size = 0x4, scoped, tag = 'scoped memory for tpu_custom_call.1']
    #allocation5 [shape = 'u8[16384]{0}', space=vmem, size = 0x4000, scoped, tag = 'input window, operand 1, single buffered']
    #allocation6 [shape = 's32[1]{0}', space=sflag, size = 0x4, scoped, tag = 'scoped memory for tpu_custom_call.1']
    #allocation7 [shape = 'u8[4096]{0}', space=vmem, size = 0x1000, scoped, tag = 'output window, operand 0, single buffered']
    %8 = vsyncpa [#allocation3], 0
    %9 = vsyncpa [#allocation6], 0
    %10 = vsyncpa [#allocation4], 0
    // Predicated region
    $region2: #{tpu_custom_call.1} parent=1 // pred_check
      _
    $region3: #{tpu_custom_call.1} parent=1 // pred_check_branch
      %12 = sbr.rel (0) target = $region5
    $region4: #{tpu_custom_call.1} parent=1 // pred_region
      %14 = vsyncadd [#allocation3], 0
      %s15 = sshll.u32 %s0, 4
      %s16 = int_to_ptr.hbm [resolvable:$true] %s15
      %s17 = sshll.u32 [#allocation2], 4
      %s18 = int_to_ptr.vmem [resolvable:$true] %s17
      %23 = dma.hbm_to_vmem [thread:$0]  %s16, 256, %s18, [#allocation3], 128, 128, 8
    $region5: #{tpu_custom_call.1} parent=1 // pred_fallthru
      _
    // Predicated region
    $region6: #{tpu_custom_call.1} parent=1 // pred_check
      _
    $region7: #{tpu_custom_call.1} parent=1 // pred_check_branch
      %25 = sbr.rel (0) target = $region9
    $region8: #{tpu_custom_call.1} parent=1 // pred_region
      %27 = vsyncadd [#allocation6], 0
      %s28 = sshll.u32 %s1, 4
      %s29 = int_to_ptr.hbm [resolvable:$true] %s28
      %s30 = sshll.u32 [#allocation5], 4
      %s31 = int_to_ptr.vmem [resolvable:$true] %s30
      %36 = dma.hbm_to_vmem [thread:$0]  %s29, 512, %s31, [#allocation6], 128, 128, 8
    $region9: #{tpu_custom_call.1} parent=1 // pred_fallthru
      _
    // Predicated region
    $region10: #{tpu_custom_call.1} parent=1 // pred_check
      _
    $region11: #{tpu_custom_call.1} parent=1 // pred_check_branch
      %38 = sbr.rel (0) target = $region13
    $region12: #{tpu_custom_call.1} parent=1 // pred_region
      _
    $region13: #{tpu_custom_call.1} parent=1 // pred_fallthru
      _
    // Predicated region
    $region14: #{tpu_custom_call.1} parent=1 // pred_check
      _
    $region15: #{tpu_custom_call.1} parent=1 // pred_check_branch
      %40 = sbr.rel (0) target = $region17
    $region16: #{tpu_custom_call.1} parent=1 // pred_region
      %42 = dma.done [#allocation3], 256
    $region17: #{tpu_custom_call.1} parent=1 // pred_fallthru
      _
    // Predicated region
    $region18: #{tpu_custom_call.1} parent=1 // pred_check
      _
    $region19: #{tpu_custom_call.1} parent=1 // pred_check_branch
      %44 = sbr.rel (0) target = $region21
    $region20: #{tpu_custom_call.1} parent=1 // pred_region
      %46 = dma.done [#allocation6], 512
    $region21: #{tpu_custom_call.1} parent=1 // pred_fallthru
      _
    %v48 = vld [vmem:[#allocation2] sm:$0xff]
    %v49 = vld [vmem:[#allocation2 + $0x8] sm:$0xff]
    %v50 = vpack.c.bf16 %v49, %v48
    %v51 = vld [vmem:[#allocation5] sm:$0xff]
    %v52 = vld [vmem:[#allocation5 + $0x8] sm:$0xff]
    %v53 = vld [vmem:[#allocation5 + $0x10] sm:$0xff]
    %v54 = vld [vmem:[#allocation5 + $0x18] sm:$0xff]
    %v55 = vpack.c.bf16 %v52, %v51
    %v56 = vpack.c.bf16 %v54, %v53
    %v57 = vld [vmem:[%s2] sm:$0x1]
    %v59 = vperm.slane %v57, 0
    %vm61 = vcmask 261120
    %v63 = vsel %vm61, %v50, 0
    %65 = vmatpush.bf16.msra.mxu0 0
    %66 = vmatpush.bf16.msra.mxu0 0
    %67 = vmatpush.bf16.msra.mxu0 0
    %68 = vmatpush.bf16.msra.mxu0 0
    %69 = vmatpush.bf16.msra.mxu0 0
    %70 = vmatpush.bf16.msra.mxu0 0
    %71 = vmatpush.bf16.msra.mxu0 %v56
    %72 = vmatpush.bf16.msra.mxu0 %v55
    %73 = vmatmul.bf16.gmra.mxu0 %v63
    %v74 = vpop.f32.mrf.mxu0
    %v75 = vadd.f32 %v59, %v74
    %v76 = vpop.f32.mrf.mxu0
    %v77 = vadd.f32 %v59, %v76
    %78 = vdwg.mxu0
    %v79 = vmul.f32 %v75, 0.35355338
    %v80 = vmul.f32 %v77, 0.35355338
    %v81 = vpack.c.bf16 %v79, %v79
    %v82 = vpack.c.bf16 %v80, %v80
    %vm83 = vcmask 257024
    %84 = vst.msk [vmem:[#allocation7] sm:$0xf] %vm83, %v81
    %85 = vst.msk [vmem:[#allocation7 + $0x4] sm:$0xf] %vm83, %v82
    // Predicated region
    $region22: #{tpu_custom_call.1} parent=1 // pred_check
      _
    $region23: #{tpu_custom_call.1} parent=1 // pred_check_branch
      %87 = sbr.rel (0) target = $region25
    $region24: #{tpu_custom_call.1} parent=1 // pred_region
      %89 = vsyncadd [#allocation4], 0
      %s90 = sshll.u32 [#allocation7], 4
      %s91 = int_to_ptr.vmem [resolvable:$true] %s90
      %s92 = sshll.u32 %s3, 4
      %s93 = int_to_ptr.hbm [resolvable:$true] %s92
      %98 = dma.vmem_to_hbm [thread:$0]  %s91, 128, %s93, [#allocation4], 64, 64, 4
    $region25: #{tpu_custom_call.1} parent=1 // pred_fallthru
      _
    // Predicated region
    $region26: #{tpu_custom_call.1} parent=1 // pred_check
      _
    $region27: #{tpu_custom_call.1} parent=1 // pred_check_branch
      %100 = sbr.rel (0) target = $region29
    $region28: #{tpu_custom_call.1} parent=1 // pred_region
      %102 = dma.done [#allocation4], 128
    $region29: #{tpu_custom_call.1} parent=1 // pred_fallthru
      _
    %103 = vsyncpa [#allocation3], 1
    %104 = vsyncpa [#allocation6], 1
    %105 = vsyncpa [#allocation4], 1

</llo_original>
